<compile_context>
chip_gen: v5e
topology: v5e:2x2
jax: 0.10.0
libtpu: 0.0.40
codegen_flags: <defaults>
</compile_context>

<pallas_src>
import functools

import jax
import jax.numpy as jnp
from jax.experimental import pallas as pl
from jax.experimental.pallas import tpu as pltpu


# ----------------------------------------------------------------------------
# Kernels
# ----------------------------------------------------------------------------
def _assignment_epilogue(z, muT_ref, musq_ref, o_ref, *, alpha: float):
    """Student-t cluster assignment for one [tb, H] block of f32 embeddings."""
    muT = muT_ref[...]          # [H, Kp]  pre-scaled by -2 (f32 or bf16)
    musq_p1 = musq_ref[...]     # [1, Kp]  = 1 + ||mu||^2, +inf on padded cols

    z_sq = jnp.sum(z * z, axis=-1, keepdims=True)                     # [tb, 1]
    zc = z.astype(muT.dtype) if muT.dtype != jnp.float32 else z
    cross = jnp.dot(zc, muT, preferred_element_type=jnp.float32)      # -2 z.mu
    # norm1p = 1 + max(||z - mu||^2, 0); padded columns are +inf -> numerator 0.
    norm1p = jnp.maximum(z_sq + musq_p1 + cross, 1.0)                 # [tb, Kp]

    if alpha == 1.0:
        numerator = pl.reciprocal(norm1p, approx=False)
    else:
        power = (alpha + 1.0) / 2.0
        numerator = (1.0 + (norm1p - 1.0) / alpha) ** (-power)

    denom_inv = pl.reciprocal(jnp.sum(numerator, axis=-1, keepdims=True),
                              approx=False)                           # [tb, 1]
    o_ref[...] = (numerator * denom_inv).astype(o_ref.dtype)


def _dec_kernel(x_ref, w_ref, b_ref, muT_ref, musq_ref, o_ref, *, alpha: float):
    """Fully-resident-weight path: encoder matmul + assignment in one shot."""
    z = (jnp.dot(x_ref[...], w_ref[...], preferred_element_type=jnp.float32)
         + b_ref[...].astype(jnp.float32))                            # [tb, H]
    _assignment_epilogue(z, muT_ref, musq_ref, o_ref, alpha=alpha)


def _dec_kernel_dsplit(x_ref, w_ref, b_ref, muT_ref, musq_ref, o_ref, z_acc,
                       *, alpha: float):
    """D-split path: accumulate z over the D grid axis, epilogue on last step."""
    d = pl.program_id(1)

    @pl.when(d == 0)
    def _():
        z_acc[...] = jnp.zeros_like(z_acc)

    z_acc[...] += jnp.dot(x_ref[...], w_ref[...],
                          preferred_element_type=jnp.float32)

    @pl.when(d == pl.num_programs(1) - 1)
    def _():
        z = z_acc[...] + b_ref[...].astype(jnp.float32)
        _assignment_epilogue(z, muT_ref, musq_ref, o_ref, alpha=alpha)


# ----------------------------------------------------------------------------
# Tiling / VMEM budgeting
# ----------------------------------------------------------------------------
def _choose_config(B, D, H, K_pad, x_itemsize, w_itemsize, muT_itemsize):
    WEIGHT_RESIDENT_LIMIT = 16 * 1024 * 1024   # beyond this, split D (v7x-safe)
    VMEM_BUDGET = 24 * 1024 * 1024             # conservative across v5e/v6e/v7x

    w_bytes = D * H * w_itemsize
    split_d = w_bytes > WEIGHT_RESIDENT_LIMIT

    if split_d:
        # Streamed (double-buffered) weight slab of td rows; td multiple of 128.
        td = max(128, min((4 * 1024 * 1024 // max(H * w_itemsize, 1))
                          // 128 * 128, 2048))
        const_bytes = (2 * td * H * w_itemsize          # weight slabs (x2 bufs)
                       + H * 4 + H * K_pad * muT_itemsize + K_pad * 4)
        per_row = (2 * (td * x_itemsize + K_pad * 4)    # streamed x / q (x2)
                   + 2 * H * 4                          # z accumulator + z
                   + 3 * K_pad * 4)                     # cross / numerator temps
    else:
        td = D
        const_bytes = w_bytes + H * 4 + H * K_pad * muT_itemsize + K_pad * 4
        per_row = (2 * (D * x_itemsize + K_pad * 4)
                   + H * 4 + 3 * K_pad * 4)

    avail = max(VMEM_BUDGET - const_bytes, 1 * 1024 * 1024)
    tb_cap = max(8, (avail // per_row) // 8 * 8)
    tb = min(1024, max(8, ((B + 7) // 8) * 8), tb_cap)

    # v7x has 2 TensorCores: make sure the parallel batch axis has >= 2 steps.
    if B >= 16:
        tb = min(tb, max(8, ((B + 1) // 2 + 7) // 8 * 8))

    # Prefer a tb that divides B (avoids the jnp.pad HBM round-trip), as long
    # as it does not shrink the tile by more than 2x.
    if B % 8 == 0 and B % tb != 0:
        for cand in range(tb, 7, -8):
            if B % cand == 0:
                if cand * 2 >= tb:
                    tb = cand
                break

    return tb, td, split_d, const_bytes, per_row


# ----------------------------------------------------------------------------
# pallas_call builder
# ----------------------------------------------------------------------------
def _build_call(*, split_d, tb, td, B_pad, D_in, H, K_pad, alpha,
                single_buffer_consts, vmem_limit):
    def const_spec(shape, index_map):
        if single_buffer_consts:
            # Constant index_map -> one VMEM buffer is enough; halves the
            # resident footprint of w_enc / muT (matters most on v7x).
            return pl.BlockSpec(shape, index_map,
                                pipeline_mode=pl.Buffered(buffer_count=1))
        return pl.BlockSpec(shape, index_map)

    if not split_d:
        kernel = functools.partial(_dec_kernel, alpha=alpha)
        grid = (B_pad // tb,)
        in_specs = [
            pl.BlockSpec((tb, D_in), lambda i: (i, 0)),      # streamed batch tile
            const_spec((D_in, H), lambda i: (0, 0)),         # encoder weight
            const_spec((1, H), lambda i: (0, 0)),            # encoder bias
            const_spec((H, K_pad), lambda i: (0, 0)),        # -2 * centers^T
            const_spec((1, K_pad), lambda i: (0, 0)),        # 1 + ||mu||^2
        ]
        out_specs = pl.BlockSpec((tb, K_pad), lambda i: (i, 0))
        scratch_shapes = []
        dims = ("parallel",)
    else:
        kernel = functools.partial(_dec_kernel_dsplit, alpha=alpha)
        grid = (B_pad // tb, D_in // td)
        in_specs = [
            pl.BlockSpec((tb, td), lambda i, d: (i, d)),     # streamed batch tile
            pl.BlockSpec((td, H), lambda i, d: (d, 0)),      # streamed weight slab
            const_spec((1, H), lambda i, d: (0, 0)),
            const_spec((H, K_pad), lambda i, d: (0, 0)),
            const_spec((1, K_pad), lambda i, d: (0, 0)),
        ]
        out_specs = pl.BlockSpec((tb, K_pad), lambda i, d: (i, 0))
        scratch_shapes = [pltpu.VMEM((tb, H), jnp.float32)]  # z accumulator
        dims = ("parallel", "arbitrary")

    return pl.pallas_call(
        kernel,
        out_shape=jax.ShapeDtypeStruct((B_pad, K_pad), jnp.float32),
        grid_spec=pltpu.PrefetchScalarGridSpec(
            num_scalar_prefetch=0,
            grid=grid,
            in_specs=in_specs,
            out_specs=out_specs,
            scratch_shapes=scratch_shapes,
        ),
        compiler_params=pltpu.CompilerParams(
            dimension_semantics=dims,
            vmem_limit_bytes=vmem_limit),
    )


# ----------------------------------------------------------------------------
# Public wrapper (DEC.forward)
# ----------------------------------------------------------------------------
def dec_forward(batch, w_enc, b_enc, cluster_centers, *,
                alpha: float = 1.0, tile_b: int | None = None):
    """DEC.forward: soft assignment q = Student-t(encoder(batch), centers)."""
    B, D = batch.shape
    Dw, H = w_enc.shape
    K, Hc = cluster_centers.shape
    assert D == Dw and H == Hc

    # Lane-dense cluster dim (one MXU output tile when K <= 128).
    K_pad = max(128, pl.cdiv(K, 128) * 128)

    # bf16 fast path for the cross matmul when activations are bf16.
    cross_dtype = jnp.bfloat16 if batch.dtype == jnp.bfloat16 else jnp.float32
    cross_itemsize = 2 if cross_dtype == jnp.bfloat16 else 4

    tb, td, split_d, const_bytes, per_row = _choose_config(
        B, D, H, K_pad, batch.dtype.itemsize, w_enc.dtype.itemsize,
        cross_itemsize)
    if tile_b is not None:
        tb = tile_b
        assert tb % 8 == 0

    B_pad = pl.cdiv(B, tb) * tb
    D_pad = pl.cdiv(D, td) * td if split_d else D

    xb = batch
    if B_pad != B or D_pad != D:
        xb = jnp.pad(batch, ((0, B_pad - B), (0, D_pad - D)))
    wz = w_enc
    if split_d and D_pad != D:
        wz = jnp.pad(w_enc, ((0, D_pad - D), (0, 0)))

    # Constant prep, done ONCE in the wrapper (not per tile):
    #  * muT pre-scaled by -2 so the kernel's cross term is already -2 z.mu
    #  * musq_p1 = 1 + ||mu||^2, with +inf in padded columns so the Student-t
    #    numerator is exactly 0 there (no in-kernel iota / where mask).
    b_enc2 = b_enc.reshape(1, H)
    mu_f32 = cluster_centers.astype(jnp.float32)
    muT_scaled = (jnp.zeros((H, K_pad), cross_dtype)
                  .at[:, :K].set((-2.0 * mu_f32.T).astype(cross_dtype)))
    musq_p1 = (jnp.full((1, K_pad), jnp.inf, jnp.float32)
               .at[:, :K].set(1.0 + jnp.sum(mu_f32 * mu_f32, axis=-1)[None, :]))

    # Explicit scoped-VMEM limit, generously covering the budgeted residents.
    est = 2 * (const_bytes + tb * per_row) + (4 << 20)
    vmem_limit = int(min(max(est, 32 << 20), 60 << 20))

    common = dict(split_d=split_d, tb=tb, td=td, B_pad=B_pad,
                  D_in=xb.shape[1], H=H, K_pad=K_pad, alpha=float(alpha),
                  vmem_limit=vmem_limit)
    args = (xb, wz, b_enc2, muT_scaled, musq_p1)
    try:
        q_pad = _build_call(single_buffer_consts=True, **common)(*args)
    except Exception:
        # Fallback for jax versions where pl.Buffered(buffer_count=1) is not
        # accepted for pallas_call input specs.
        q_pad = _build_call(single_buffer_consts=False, **common)(*args)

    return q_pad[:B, :K]


# ----------------------------------------------------------------------------
# Reference & self-test
# ----------------------------------------------------------------------------
def _reference(batch, w_enc, b_enc, cluster_centers, alpha=1.0):
    z = batch.astype(jnp.float32) @ w_enc.astype(jnp.float32) + b_enc
    diff = z[:, None, :] - cluster_centers[None, :, :]
    norm_sq = jnp.sum(diff * diff, axis=-1)
    power = (alpha + 1.0) / 2.0
    num = (1.0 + norm_sq / alpha) ** (-power)
    return num / jnp.sum(num, axis=-1, keepdims=True)


if __name__ == "__main__":
    # Small shapes consistent with DEC.forward: batch [B, embedding_dim].
    B, D, H, K = 8, 32, 32, 10
    alpha = 1.0

    key = jax.random.PRNGKey(0)
    k_x, k_w, k_b, k_mu = jax.random.split(key, 4)

    batch = jax.random.normal(k_x, (B, D), dtype=jnp.float32)
    # Deterministic synthetic parameters (single-Linear encoder + centers).
    w_enc = jax.random.normal(k_w, (D, H), dtype=jnp.float32) * 0.1
    b_enc = jax.random.normal(k_b, (1, H), dtype=jnp.float32) * 0.01
    cluster_centers = jax.random.normal(k_mu, (K, H), dtype=jnp.float32)

    q = dec_forward(batch, w_enc, b_enc, cluster_centers, alpha=alpha)
    q = jax.block_until_ready(q)

    q_ref = _reference(batch, w_enc, b_enc, cluster_centers, alpha=alpha)
    assert q.shape == (B, K)
    assert jnp.allclose(jnp.sum(q, axis=-1), 1.0, atol=1e-5)
    assert jnp.allclose(q, q_ref, atol=1e-5, rtol=1e-5)

    print("KERNEL_OK")
</pallas_src>

<mosaic_0001>
module attributes {stable_mosaic.version = 11 : i64} {
  func.func @_dec_kernel(%arg0: i32, %arg1: memref<8x32xf32, #tpu.memory_space<vmem>>, %arg2: memref<32x32xf32, #tpu.memory_space<vmem>>, %arg3: memref<1x32xf32, #tpu.memory_space<vmem>>, %arg4: memref<32x128xf32, #tpu.memory_space<vmem>>, %arg5: memref<1x128xf32, #tpu.memory_space<vmem>>, %arg6: memref<8x128xf32, #tpu.memory_space<vmem>>) attributes {dimension_semantics = [#tpu.dimension_semantics<parallel>], iteration_bounds = array<i64: 1>, scalar_prefetch = 0 : i64, scratch_operands = 0 : i64, tpu.core_type = #tpu.core_type<tc>, window_params = [{transform_indices = @transform_0, window_bounds = array<i64: 8, 32>}, {pipeline_mode = #tpu.pipeline_mode<synchronous>, transform_indices = @transform_1, window_bounds = array<i64: 32, 32>}, {pipeline_mode = #tpu.pipeline_mode<synchronous>, transform_indices = @transform_2, window_bounds = array<i64: 1, 32>}, {pipeline_mode = #tpu.pipeline_mode<synchronous>, transform_indices = @transform_3, window_bounds = array<i64: 32, 128>}, {pipeline_mode = #tpu.pipeline_mode<synchronous>, transform_indices = @transform_4, window_bounds = array<i64: 1, 128>}, {transform_indices = @transform_5, window_bounds = array<i64: 8, 128>}]} {
    %c0 = arith.constant 0 : index
    %c0_0 = arith.constant 0 : index
    %0 = vector.load %arg1[%c0, %c0_0] : memref<8x32xf32, #tpu.memory_space<vmem>>, vector<8x32xf32>
    %c0_1 = arith.constant 0 : index
    %c0_2 = arith.constant 0 : index
    %1 = vector.load %arg2[%c0_1, %c0_2] : memref<32x32xf32, #tpu.memory_space<vmem>>, vector<32x32xf32>
    %cst = arith.constant dense<0.000000e+00> : vector<8x32xf32>
    %2 = tpu.matmul %0, %1, %cst {dimension_numbers = #tpu.dot_dimension_numbers<[1], [0], [0], [1], [0, 0, 1, 1], [], []>} : vector<8x32xf32>, vector<32x32xf32>, vector<8x32xf32> -> vector<8x32xf32>
    %c0_3 = arith.constant 0 : index
    %c0_4 = arith.constant 0 : index
    %3 = vector.load %arg3[%c0_3, %c0_4] : memref<1x32xf32, #tpu.memory_space<vmem>>, vector<1x32xf32>
    %4 = vector.broadcast %3 : vector<1x32xf32> to vector<8x32xf32>
    %5 = arith.addf %2, %4 : vector<8x32xf32>
    %c0_5 = arith.constant 0 : index
    %c0_6 = arith.constant 0 : index
    %6 = vector.load %arg4[%c0_5, %c0_6] : memref<32x128xf32, #tpu.memory_space<vmem>>, vector<32x128xf32>
    %c0_7 = arith.constant 0 : index
    %c0_8 = arith.constant 0 : index
    %7 = vector.load %arg5[%c0_7, %c0_8] : memref<1x128xf32, #tpu.memory_space<vmem>>, vector<1x128xf32>
    %8 = arith.mulf %5, %5 : vector<8x32xf32>
    %cst_9 = arith.constant dense<0.000000e+00> : vector<8xf32>
    %9 = vector.multi_reduction <add>, %8, %cst_9 [1] : vector<8x32xf32> to vector<8xf32>
    %10 = vector.shape_cast %9 : vector<8xf32> to vector<8x1xf32>
    %cst_10 = arith.constant dense<0.000000e+00> : vector<8x128xf32>
    %11 = tpu.matmul %5, %6, %cst_10 {dimension_numbers = #tpu.dot_dimension_numbers<[1], [0], [0], [1], [0, 0, 1, 1], [], []>} : vector<8x32xf32>, vector<32x128xf32>, vector<8x128xf32> -> vector<8x128xf32>
    %12 = vector.broadcast %10 : vector<8x1xf32> to vector<8x128xf32>
    %13 = vector.broadcast %7 : vector<1x128xf32> to vector<8x128xf32>
    %14 = arith.addf %12, %13 : vector<8x128xf32>
    %15 = arith.addf %14, %11 : vector<8x128xf32>
    %cst_11 = arith.constant 1.000000e+00 : f32
    %16 = vector.broadcast %cst_11 : f32 to vector<8x128xf32>
    %17 = arith.maximumf %15, %16 : vector<8x128xf32>
    %18 = tpu.reciprocal %17 : vector<8x128xf32> -> vector<8x128xf32>
    %cst_12 = arith.constant dense<0.000000e+00> : vector<8xf32>
    %19 = vector.multi_reduction <add>, %18, %cst_12 [1] : vector<8x128xf32> to vector<8xf32>
    %20 = vector.shape_cast %19 : vector<8xf32> to vector<8x1xf32>
    %21 = tpu.reciprocal %20 : vector<8x1xf32> -> vector<8x1xf32>
    %22 = vector.broadcast %21 : vector<8x1xf32> to vector<8x128xf32>
    %23 = arith.mulf %18, %22 : vector<8x128xf32>
    %c0_13 = arith.constant 0 : index
    %c0_14 = arith.constant 0 : index
    %24 = vector.load %arg6[%c0_13, %c0_14] : memref<8x128xf32, #tpu.memory_space<vmem>>, vector<8x128xf32>
    tpu.vector_store %arg6[%c0_13, %c0_14], %23 {strides = array<i32>} : memref<8x128xf32, #tpu.memory_space<vmem>>, vector<8x128xf32>,
    return
  }
  func.func @transform_0(%arg0: i32) -> (i32, i32) {
    %c0_i32 = arith.constant 0 : i32
    %c0_i32_0 = arith.constant 0 : i32
    return %arg0, %c0_i32 : i32, i32
  }
  func.func @transform_1(%arg0: i32) -> (i32, i32) {
    %c0_i32 = arith.constant 0 : i32
    %c0_i32_0 = arith.constant 0 : i32
    %c0_i32_1 = arith.constant 0 : i32
    return %c0_i32, %c0_i32_0 : i32, i32
  }
  func.func @transform_2(%arg0: i32) -> (i32, i32) {
    %c0_i32 = arith.constant 0 : i32
    %c0_i32_0 = arith.constant 0 : i32
    %c0_i32_1 = arith.constant 0 : i32
    return %c0_i32, %c0_i32_0 : i32, i32
  }
  func.func @transform_3(%arg0: i32) -> (i32, i32) {
    %c0_i32 = arith.constant 0 : i32
    %c0_i32_0 = arith.constant 0 : i32
    %c0_i32_1 = arith.constant 0 : i32
    return %c0_i32, %c0_i32_0 : i32, i32
  }
  func.func @transform_4(%arg0: i32) -> (i32, i32) {
    %c0_i32 = arith.constant 0 : i32
    %c0_i32_0 = arith.constant 0 : i32
    %c0_i32_1 = arith.constant 0 : i32
    return %c0_i32, %c0_i32_0 : i32, i32
  }
  func.func @transform_5(%arg0: i32) -> (i32, i32) {
    %c0_i32 = arith.constant 0 : i32
    %c0_i32_0 = arith.constant 0 : i32
    return %arg0, %c0_i32 : i32, i32
  }
}

module attributes {stable_mosaic.version = 11 : i64} {
  func.func @_dec_kernel(%arg0: i32, %arg1: memref<8x32xf32, #tpu.memory_space<vmem>>, %arg2: memref<32x32xf32, #tpu.memory_space<vmem>>, %arg3: memref<1x32xf32, #tpu.memory_space<vmem>>, %arg4: memref<32x128xf32, #tpu.memory_space<vmem>>, %arg5: memref<1x128xf32, #tpu.memory_space<vmem>>, %arg6: memref<8x128xf32, #tpu.memory_space<vmem>>) attributes {dimension_semantics = [#tpu.dimension_semantics<parallel>], iteration_bounds = array<i64: 1>, scalar_prefetch = 0 : i64, scratch_operands = 0 : i64, tpu.core_type = #tpu.core_type<tc>, window_params = [{transform_indices = @transform_0, window_bounds = array<i64: 8, 32>}, {pipeline_mode = #tpu.pipeline_mode<synchronous>, transform_indices = @transform_1, window_bounds = array<i64: 32, 32>}, {pipeline_mode = #tpu.pipeline_mode<synchronous>, transform_indices = @transform_2, window_bounds = array<i64: 1, 32>}, {pipeline_mode = #tpu.pipeline_mode<synchronous>, transform_indices = @transform_3, window_bounds = array<i64: 32, 128>}, {pipeline_mode = #tpu.pipeline_mode<synchronous>, transform_indices = @transform_4, window_bounds = array<i64: 1, 128>}, {transform_indices = @transform_5, window_bounds = array<i64: 8, 128>}]} {
    %c0 = arith.constant 0 : index
    %c0_0 = arith.constant 0 : index
    %0 = vector.load %arg1[%c0, %c0_0] : memref<8x32xf32, #tpu.memory_space<vmem>>, vector<8x32xf32>
    %c0_1 = arith.constant 0 : index
    %c0_2 = arith.constant 0 : index
    %1 = vector.load %arg2[%c0_1, %c0_2] : memref<32x32xf32, #tpu.memory_space<vmem>>, vector<32x32xf32>
    %cst = arith.constant dense<0.000000e+00> : vector<8x32xf32>
    %2 = tpu.matmul %0, %1, %cst {dimension_numbers = #tpu.dot_dimension_numbers<[1], [0], [0], [1], [0, 0, 1, 1], [], []>} : vector<8x32xf32>, vector<32x32xf32>, vector<8x32xf32> -> vector<8x32xf32>
    %c0_3 = arith.constant 0 : index
    %c0_4 = arith.constant 0 : index
    %3 = vector.load %arg3[%c0_3, %c0_4] : memref<1x32xf32, #tpu.memory_space<vmem>>, vector<1x32xf32>
    %4 = vector.broadcast %3 : vector<1x32xf32> to vector<8x32xf32>
    %5 = arith.addf %2, %4 : vector<8x32xf32>
    %c0_5 = arith.constant 0 : index
    %c0_6 = arith.constant 0 : index
    %6 = vector.load %arg4[%c0_5, %c0_6] : memref<32x128xf32, #tpu.memory_space<vmem>>, vector<32x128xf32>
    %c0_7 = arith.constant 0 : index
    %c0_8 = arith.constant 0 : index
    %7 = vector.load %arg5[%c0_7, %c0_8] : memref<1x128xf32, #tpu.memory_space<vmem>>, vector<1x128xf32>
    %8 = arith.mulf %5, %5 : vector<8x32xf32>
    %cst_9 = arith.constant dense<0.000000e+00> : vector<8xf32>
    %9 = vector.multi_reduction <add>, %8, %cst_9 [1] : vector<8x32xf32> to vector<8xf32>
    %10 = vector.shape_cast %9 : vector<8xf32> to vector<8x1xf32>
    %cst_10 = arith.constant dense<0.000000e+00> : vector<8x128xf32>
    %11 = tpu.matmul %5, %6, %cst_10 {dimension_numbers = #tpu.dot_dimension_numbers<[1], [0], [0], [1], [0, 0, 1, 1], [], []>} : vector<8x32xf32>, vector<32x128xf32>, vector<8x128xf32> -> vector<8x128xf32>
    %12 = vector.broadcast %10 : vector<8x1xf32> to vector<8x128xf32>
    %13 = vector.broadcast %7 : vector<1x128xf32> to vector<8x128xf32>
    %14 = arith.addf %12, %13 : vector<8x128xf32>
    %15 = arith.addf %14, %11 : vector<8x128xf32>
    %cst_11 = arith.constant 1.000000e+00 : f32
    %16 = vector.broadcast %cst_11 : f32 to vector<8x128xf32>
    %17 = arith.maximumf %15, %16 : vector<8x128xf32>
    %18 = tpu.reciprocal %17 : vector<8x128xf32> -> vector<8x128xf32>
    %cst_12 = arith.constant dense<0.000000e+00> : vector<8xf32>
    %19 = vector.multi_reduction <add>, %18, %cst_12 [1] : vector<8x128xf32> to vector<8xf32>
    %20 = vector.shape_cast %19 : vector<8xf32> to vector<8x1xf32>
    %21 = tpu.reciprocal %20 : vector<8x1xf32> -> vector<8x1xf32>
    %22 = vector.broadcast %21 : vector<8x1xf32> to vector<8x128xf32>
    %23 = arith.mulf %18, %22 : vector<8x128xf32>
    %c0_13 = arith.constant 0 : index
    %c0_14 = arith.constant 0 : index
    %24 = vector.load %arg6[%c0_13, %c0_14] : memref<8x128xf32, #tpu.memory_space<vmem>>, vector<8x128xf32>
    tpu.vector_store %arg6[%c0_13, %c0_14], %23 {strides = array<i32>} : memref<8x128xf32, #tpu.memory_space<vmem>>, vector<8x128xf32>,
    return
  }
  func.func @transform_0(%arg0: i32) -> (i32, i32) {
    %c0_i32 = arith.constant 0 : i32
    %c0_i32_0 = arith.constant 0 : i32
    return %arg0, %c0_i32 : i32, i32
  }
  func.func @transform_1(%arg0: i32) -> (i32, i32) {
    %c0_i32 = arith.constant 0 : i32
    %c0_i32_0 = arith.constant 0 : i32
    %c0_i32_1 = arith.constant 0 : i32
    return %c0_i32, %c0_i32_0 : i32, i32
  }
  func.func @transform_2(%arg0: i32) -> (i32, i32) {
    %c0_i32 = arith.constant 0 : i32
    %c0_i32_0 = arith.constant 0 : i32
    %c0_i32_1 = arith.constant 0 : i32
    return %c0_i32, %c0_i32_0 : i32, i32
  }
  func.func @transform_3(%arg0: i32) -> (i32, i32) {
    %c0_i32 = arith.constant 0 : i32
    %c0_i32_0 = arith.constant 0 : i32
    %c0_i32_1 = arith.constant 0 : i32
    return %c0_i32, %c0_i32_0 : i32, i32
  }
  func.func @transform_4(%arg0: i32) -> (i32, i32) {
    %c0_i32 = arith.constant 0 : i32
    %c0_i32_0 = arith.constant 0 : i32
    %c0_i32_1 = arith.constant 0 : i32
    return %c0_i32, %c0_i32_0 : i32, i32
  }
  func.func @transform_5(%arg0: i32) -> (i32, i32) {
    %c0_i32 = arith.constant 0 : i32
    %c0_i32_0 = arith.constant 0 : i32
    return %arg0, %c0_i32 : i32, i32
  }
}

</mosaic_0001>

<llo_original>
// kernel: tpu_custom_call.1
$region0: #{tpu_custom_call.1}
  #allocation0 [shape = 'u32[]', space=smem, size = 0x4, offset = 0x4, fixed_abs, tag = 'smem constant byte address 0x4 - core index']
  #allocation1 [shape = 'u32[72,128]{1,0:T(1,128)}', space=vmem, size = 0x9000, scoped, tag = 'internal scratch']
  %s0 = inlined_call_operand.hbm [shape: f32[8,32], index: 0, kind: input, shape index: {}]
  %s1 = inlined_call_operand.hbm [shape: f32[32,32], index: 1, kind: input, shape index: {}]
  %s2 = inlined_call_operand.vmem [shape: f32[1,32], index: 2, kind: input, shape index: {}]
  %s3 = inlined_call_operand.hbm [shape: f32[32,128], index: 3, kind: input, shape index: {}]
  %s4 = inlined_call_operand.vmem [shape: f32[1,128], index: 4, kind: input, shape index: {}]
  %s5 = inlined_call_operand.hbm [shape: f32[8,128], index: 5, kind: output, shape index: {}]
  %s6 = sld [smem:[#allocation0]]
  $region42: #{tpu_custom_call.1} parent=0
    _
  %s8 = ssub.s32 1, %s6
  %s9 = scalar_select 0, %s8, %s6
  $region1: #{tpu_custom_call.1} parent=0
    #allocation2 [shape = 'u8[4096]{0}', space=vmem, size = 0x1000, scoped, tag = 'input window, operand 0, single buffered']
    #allocation3 [shape = 's32[1]{0}', space=sflag, size = 0x4, scoped, tag = 'scoped memory for tpu_custom_call.1']
    #allocation4 [shape = 's32[1]{0}', space=sflag, size = 0x4, scoped, tag = 'scoped memory for tpu_custom_call.1']
    #allocation5 [shape = 'u8[16384]{0}', space=vmem, size = 0x4000, scoped, tag = 'input window, operand 1, single buffered']
    #allocation6 [shape = 's32[1]{0}', space=sflag, size = 0x4, scoped, tag = 'scoped memory for tpu_custom_call.1']
    #allocation7 [shape = 'u8[16384]{0}', space=vmem, size = 0x4000, scoped, tag = 'input window, operand 3, single buffered']
    #allocation8 [shape = 'u8[4096]{0}', space=vmem, size = 0x1000, scoped, tag = 'output window, operand 0, single buffered']
    %10 = vsyncpa [#allocation3], 0
    %11 = vsyncpa [#allocation6], 0
    %12 = vsyncpa [#allocation4], 0
    // Predicated region
    $region2: #{tpu_custom_call.1} parent=1 // pred_check
      _
    $region3: #{tpu_custom_call.1} parent=1 // pred_check_branch
      %14 = sbr.rel (0) target = $region5
    $region4: #{tpu_custom_call.1} parent=1 // pred_region
      %16 = vsyncadd [#allocation3], 0
      %s18 = sshll.u32 %s0, 4
      %s19 = int_to_ptr.hbm [resolvable:$true] %s18
      %s20 = sshll.u32 [#allocation2], 4
      %s21 = int_to_ptr.vmem [resolvable:$true] %s20
      %23 = dma.hbm_to_vmem [thread:$0]  %s19, 128, %s21, [#allocation3]
    $region5: #{tpu_custom_call.1} parent=1 // pred_fallthru
      _
    // Predicated region
    $region6: #{tpu_custom_call.1} parent=1 // pred_check
      _
    $region7: #{tpu_custom_call.1} parent=1 // pred_check_branch
      %25 = sbr.rel (0) target = $region9
    $region8: #{tpu_custom_call.1} parent=1 // pred_region
      %27 = vsyncadd [#allocation6], 0
      %s28 = sshll.u32 %s1, 4
      %s29 = int_to_ptr.hbm [resolvable:$true] %s28
      %s30 = sshll.u32 [#allocation5], 4
      %s31 = int_to_ptr.vmem [resolvable:$true] %s30
      %36 = dma.hbm_to_vmem [thread:$0]  %s29, 512, %s31, [#allocation6], 128, 128, 8
    $region9: #{tpu_custom_call.1} parent=1 // pred_fallthru
      _
    // Predicated region
    $region10: #{tpu_custom_call.1} parent=1 // pred_check
      _
    $region11: #{tpu_custom_call.1} parent=1 // pred_check_branch
      %38 = sbr.rel (0) target = $region13
    $region12: #{tpu_custom_call.1} parent=1 // pred_region
      _
    $region13: #{tpu_custom_call.1} parent=1 // pred_fallthru
      _
    // Predicated region
    $region14: #{tpu_custom_call.1} parent=1 // pred_check
      _
    $region15: #{tpu_custom_call.1} parent=1 // pred_check_branch
      %40 = sbr.rel (0) target = $region17
    $region16: #{tpu_custom_call.1} parent=1 // pred_region
      %42 = vsyncadd [#allocation6], 0
      %s43 = sshll.u32 %s3, 4
      %s44 = int_to_ptr.hbm [resolvable:$true] %s43
      %s45 = sshll.u32 [#allocation7], 4
      %s46 = int_to_ptr.vmem [resolvable:$true] %s45
      %51 = dma.hbm_to_vmem [thread:$0]  %s44, 512, %s46, [#allocation6], 128, 128, 8
    $region17: #{tpu_custom_call.1} parent=1 // pred_fallthru
      _
    // Predicated region
    $region18: #{tpu_custom_call.1} parent=1 // pred_check
      _
    $region19: #{tpu_custom_call.1} parent=1 // pred_check_branch
      %53 = sbr.rel (0) target = $region21
    $region20: #{tpu_custom_call.1} parent=1 // pred_region
      _
    $region21: #{tpu_custom_call.1} parent=1 // pred_fallthru
      _
    // Predicated region
    $region22: #{tpu_custom_call.1} parent=1 // pred_check
      _
    $region23: #{tpu_custom_call.1} parent=1 // pred_check_branch
      %55 = sbr.rel (0) target = $region25
    $region24: #{tpu_custom_call.1} parent=1 // pred_region
      %57 = dma.done [#allocation3], 128
    $region25: #{tpu_custom_call.1} parent=1 // pred_fallthru
      _
    // Predicated region
    $region26: #{tpu_custom_call.1} parent=1 // pred_check
      _
    $region27: #{tpu_custom_call.1} parent=1 // pred_check_branch
      %59 = sbr.rel (0) target = $region29
    $region28: #{tpu_custom_call.1} parent=1 // pred_region
      %61 = dma.done [#allocation6], 512
    $region29: #{tpu_custom_call.1} parent=1 // pred_fallthru
      _
    // Predicated region
    $region30: #{tpu_custom_call.1} parent=1 // pred_check
      _
    $region31: #{tpu_custom_call.1} parent=1 // pred_check_branch
      %63 = sbr.rel (0) target = $region33
    $region32: #{tpu_custom_call.1} parent=1 // pred_region
      %65 = dma.done [#allocation6], 512
    $region33: #{tpu_custom_call.1} parent=1 // pred_fallthru
      _
    %v66 = vld [vmem:[#allocation2] sm:$0xff]
    %v67 = vld [vmem:[#allocation5] sm:$0xff]
    %v68 = vld [vmem:[#allocation5 + $0x8] sm:$0xff]
    %v69 = vld [vmem:[#allocation5 + $0x10] sm:$0xff]
    %v70 = vld [vmem:[#allocation5 + $0x18] sm:$0xff]
    %v71 = vld [vmem:[%s2] sm:$0x1]
    %v73 = vperm.slane %v71, 0
    %vm75 = vcmask 261120
    %v77 = vsel %vm75, %v66, 0
    %79 = vmatpush.msra.mxu0 0.0
    %80 = vmatpush.msra.mxu0 0.0
    %81 = vmatpush.msra.mxu0 0.0
    %82 = vmatpush.msra.mxu0 0.0
    %83 = vmatpush.msra.mxu0 0.0
    %84 = vmatpush.msra.mxu0 0.0
    %85 = vmatpush.msra.mxu0 0.0
    %86 = vmatpush.msra.mxu0 0.0
    %87 = vmatpush.msra.mxu0 0.0
    %88 = vmatpush.msra.mxu0 0.0
    %89 = vmatpush.msra.mxu0 0.0
    %90 = vmatpush.msra.mxu0 0.0
    %91 = vmatpush.msra.mxu0 %v70
    %92 = vmatpush.msra.mxu0 %v69
    %93 = vmatpush.msra.mxu0 %v68
    %94 = vmatpush.msra.mxu0 %v67
    %95 = vmatmul.f32.gmra.mxu0 %v77
    %v96 = vpop.f32.mrf.mxu0
    %v97 = vadd.f32 %v73, %v96
    %98 = vdwg.mxu0
    %v99 = vld [vmem:[#allocation7] sm:$0xff]
    %v100 = vld [vmem:[#allocation7 + $0x8] sm:$0xff]
    %v101 = vld [vmem:[#allocation7 + $0x10] sm:$0xff]
    %v102 = vld [vmem:[#allocation7 + $0x18] sm:$0xff]
    %v103 = vld [vmem:[%s4] sm:$0x1]
    %v104 = vmul.f32 %v97, %v97
    %v105 = vsel %vm75, %v104, 0.0
    %106 = vadd.xlane.f32.xlu0 %v105
    %v107 = vpop.xlane.xlu0 %106
    %v109 = vsel %vm75, %v97, 0
    %111 = vmatpush.msra.mxu0 0.0
    %112 = vmatpush.msra.mxu0 0.0
    %113 = vmatpush.msra.mxu0 0.0
    %114 = vmatpush.msra.mxu0 0.0
    %115 = vmatpush.msra.mxu0 0.0
    %116 = vmatpush.msra.mxu0 0.0
    %117 = vmatpush.msra.mxu0 0.0
    %118 = vmatpush.msra.mxu0 0.0
    %119 = vmatpush.msra.mxu0 0.0
    %120 = vmatpush.msra.mxu0 0.0
    %121 = vmatpush.msra.mxu0 0.0
    %122 = vmatpush.msra.mxu0 0.0
    %123 = vmatpush.msra.mxu0 %v102
    %124 = vmatpush.msra.mxu0 %v101
    %125 = vmatpush.msra.mxu0 %v100
    %126 = vmatpush.msra.mxu0 %v99
    %127 = vmatmul.f32.gmra.mxu0 %v109
    %v128 = vpop.f32.mrf.mxu0
    %v129 = vadd.f32 0.0, %v128
    %130 = vdwg.mxu0
    %v132 = vperm.slane %v103, 0
    %v134 = vadd.f32 %v107, %v132
    %v135 = vadd.f32 %v134, %v129
    %v136 = vmax.f32 %v135, 1.0
    %v137 = vrcp.pop %v136
    %v138 = vmul.f32 %v136, %v137
    %v139 = vsub.f32 1.0, %v138
    %v140 = vmul.f32 %v137, %v139
    %v141 = vadd.f32 %v137, %v140
    %vm142 = vweird.f32 %v136
    %vm143 = vweird.f32 %v137
    %vm144 = vmor %vm142, %vm143
    %v145 = vsel %vm144, %v137, %v141
    %v146 = vand.u32 2147483647, %v136
    %vm147 = vcmp.eq.f32.partialorder %v146, 8.507059e+37
    %v148 = vand.u32 %v136, 2147483648
    %v149 = vor.u32 1.1754944e-38, %v148
    %v150 = vsel %vm147, %v149, %v145
    %151 = vadd.xlane.f32.xlu0 %v150
    %v152 = vpop.xlane.xlu0 %151
    %v153 = vrcp.pop %v152
    %v154 = vmul.f32 %v152, %v153
    %v155 = vsub.f32 1.0, %v154
    %v156 = vmul.f32 %v153, %v155
    %v157 = vadd.f32 %v153, %v156
    %vm158 = vweird.f32 %v152
    %vm159 = vweird.f32 %v153
    %vm160 = vmor %vm158, %vm159
    %v161 = vsel %vm160, %v153, %v157
    %v162 = vand.u32 2147483647, %v152
    %vm163 = vcmp.eq.f32.partialorder %v162, 8.507059e+37
    %v164 = vand.u32 %v152, 2147483648
    %v165 = vor.u32 1.1754944e-38, %v164
    %v166 = vsel %vm163, %v165, %v161
    %v167 = vmul.f32 %v150, %v166
    %168 = vst [vmem:[#allocation8] sm:$0xff] %v167
    // Predicated region
    $region34: #{tpu_custom_call.1} parent=1 // pred_check
      _
    $region35: #{tpu_custom_call.1} parent=1 // pred_check_branch
      %170 = sbr.rel (0) target = $region37
    $region36: #{tpu_custom_call.1} parent=1 // pred_region
      %172 = vsyncadd [#allocation4], 0
      %s174 = sshll.u32 [#allocation8], 4
      %s175 = int_to_ptr.vmem [resolvable:$true] %s174
      %s176 = sshll.u32 %s5, 4
      %s177 = int_to_ptr.hbm [resolvable:$true] %s176
      %179 = dma.vmem_to_hbm [thread:$0]  %s175, 128, %s177, [#allocation4]
    $region37: #{tpu_custom_call.1} parent=1 // pred_fallthru
      _
    // Predicated region
    $region38: #{tpu_custom_call.1} parent=1 // pred_check
      _
    $region39: #{tpu_custom_call.1} parent=1 // pred_check_branch
      %181 = sbr.rel (0) target = $region41
    $region40: #{tpu_custom_call.1} parent=1 // pred_region
      %183 = dma.done [#allocation4], 128
    $region41: #{tpu_custom_call.1} parent=1 // pred_fallthru
      _
    %184 = vsyncpa [#allocation3], 1
    %185 = vsyncpa [#allocation6], 1
    %186 = vsyncpa [#allocation4], 1

// kernel: tpu_custom_call.1
$region0: #{tpu_custom_call.1}
  #allocation0 [shape = 'u32[]', space=smem, size = 0x4, offset = 0x4, fixed_abs, tag = 'smem constant byte address 0x4 - core index']
  #allocation1 [shape = 'u32[72,128]{1,0:T(1,128)}', space=vmem, size = 0x9000, scoped, tag = 'internal scratch']
  %s0 = inlined_call_operand.hbm [shape: f32[8,32], index: 0, kind: input, shape index: {}]
  %s1 = inlined_call_operand.hbm [shape: f32[32,32], index: 1, kind: input, shape index: {}]
  %s2 = inlined_call_operand.vmem [shape: f32[1,32], index: 2, kind: input, shape index: {}]
  %s3 = inlined_call_operand.hbm [shape: f32[32,128], index: 3, kind: input, shape index: {}]
  %s4 = inlined_call_operand.vmem [shape: f32[1,128], index: 4, kind: input, shape index: {}]
  %s5 = inlined_call_operand.hbm [shape: f32[8,128], index: 5, kind: output, shape index: {}]
  %s6 = sld [smem:[#allocation0]]
  $region42: #{tpu_custom_call.1} parent=0
    _
  %s8 = ssub.s32 1, %s6
  %s9 = scalar_select 0, %s8, %s6
  $region1: #{tpu_custom_call.1} parent=0
    #allocation2 [shape = 'u8[4096]{0}', space=vmem, size = 0x1000, scoped, tag = 'input window, operand 0, single buffered']
    #allocation3 [shape = 's32[1]{0}', space=sflag, size = 0x4, scoped, tag = 'scoped memory for tpu_custom_call.1']
    #allocation4 [shape = 's32[1]{0}', space=sflag, size = 0x4, scoped, tag = 'scoped memory for tpu_custom_call.1']
    #allocation5 [shape = 'u8[16384]{0}', space=vmem, size = 0x4000, scoped, tag = 'input window, operand 1, single buffered']
    #allocation6 [shape = 's32[1]{0}', space=sflag, size = 0x4, scoped, tag = 'scoped memory for tpu_custom_call.1']
    #allocation7 [shape = 'u8[16384]{0}', space=vmem, size = 0x4000, scoped, tag = 'input window, operand 3, single buffered']
    #allocation8 [shape = 'u8[4096]{0}', space=vmem, size = 0x1000, scoped, tag = 'output window, operand 0, single buffered']
    %10 = vsyncpa [#allocation3], 0
    %11 = vsyncpa [#allocation6], 0
    %12 = vsyncpa [#allocation4], 0
    // Predicated region
    $region2: #{tpu_custom_call.1} parent=1 // pred_check
      _
    $region3: #{tpu_custom_call.1} parent=1 // pred_check_branch
      %14 = sbr.rel (0) target = $region5
    $region4: #{tpu_custom_call.1} parent=1 // pred_region
      %16 = vsyncadd [#allocation3], 0
      %s18 = sshll.u32 %s0, 4
      %s19 = int_to_ptr.hbm [resolvable:$true] %s18
      %s20 = sshll.u32 [#allocation2], 4
      %s21 = int_to_ptr.vmem [resolvable:$true] %s20
      %23 = dma.hbm_to_vmem [thread:$0]  %s19, 128, %s21, [#allocation3]
    $region5: #{tpu_custom_call.1} parent=1 // pred_fallthru
      _
    // Predicated region
    $region6: #{tpu_custom_call.1} parent=1 // pred_check
      _
    $region7: #{tpu_custom_call.1} parent=1 // pred_check_branch
      %25 = sbr.rel (0) target = $region9
    $region8: #{tpu_custom_call.1} parent=1 // pred_region
      %27 = vsyncadd [#allocation6], 0
      %s28 = sshll.u32 %s1, 4
      %s29 = int_to_ptr.hbm [resolvable:$true] %s28
      %s30 = sshll.u32 [#allocation5], 4
      %s31 = int_to_ptr.vmem [resolvable:$true] %s30
      %36 = dma.hbm_to_vmem [thread:$0]  %s29, 512, %s31, [#allocation6], 128, 128, 8
    $region9: #{tpu_custom_call.1} parent=1 // pred_fallthru
      _
    // Predicated region
    $region10: #{tpu_custom_call.1} parent=1 // pred_check
      _
    $region11: #{tpu_custom_call.1} parent=1 // pred_check_branch
      %38 = sbr.rel (0) target = $region13
    $region12: #{tpu_custom_call.1} parent=1 // pred_region
      _
    $region13: #{tpu_custom_call.1} parent=1 // pred_fallthru
      _
    // Predicated region
    $region14: #{tpu_custom_call.1} parent=1 // pred_check
      _
    $region15: #{tpu_custom_call.1} parent=1 // pred_check_branch
      %40 = sbr.rel (0) target = $region17
    $region16: #{tpu_custom_call.1} parent=1 // pred_region
      %42 = vsyncadd [#allocation6], 0
      %s43 = sshll.u32 %s3, 4
      %s44 = int_to_ptr.hbm [resolvable:$true] %s43
      %s45 = sshll.u32 [#allocation7], 4
      %s46 = int_to_ptr.vmem [resolvable:$true] %s45
      %51 = dma.hbm_to_vmem [thread:$0]  %s44, 512, %s46, [#allocation6], 128, 128, 8
    $region17: #{tpu_custom_call.1} parent=1 // pred_fallthru
      _
    // Predicated region
    $region18: #{tpu_custom_call.1} parent=1 // pred_check
      _
    $region19: #{tpu_custom_call.1} parent=1 // pred_check_branch
      %53 = sbr.rel (0) target = $region21
    $region20: #{tpu_custom_call.1} parent=1 // pred_region
      _
    $region21: #{tpu_custom_call.1} parent=1 // pred_fallthru
      _
    // Predicated region
    $region22: #{tpu_custom_call.1} parent=1 // pred_check
      _
    $region23: #{tpu_custom_call.1} parent=1 // pred_check_branch
      %55 = sbr.rel (0) target = $region25
    $region24: #{tpu_custom_call.1} parent=1 // pred_region
      %57 = dma.done [#allocation3], 128
    $region25: #{tpu_custom_call.1} parent=1 // pred_fallthru
      _
    // Predicated region
    $region26: #{tpu_custom_call.1} parent=1 // pred_check
      _
    $region27: #{tpu_custom_call.1} parent=1 // pred_check_branch
      %59 = sbr.rel (0) target = $region29
    $region28: #{tpu_custom_call.1} parent=1 // pred_region
      %61 = dma.done [#allocation6], 512
    $region29: #{tpu_custom_call.1} parent=1 // pred_fallthru
      _
    // Predicated region
    $region30: #{tpu_custom_call.1} parent=1 // pred_check
      _
    $region31: #{tpu_custom_call.1} parent=1 // pred_check_branch
      %63 = sbr.rel (0) target = $region33
    $region32: #{tpu_custom_call.1} parent=1 // pred_region
      %65 = dma.done [#allocation6], 512
    $region33: #{tpu_custom_call.1} parent=1 // pred_fallthru
      _
    %v66 = vld [vmem:[#allocation2] sm:$0xff]
    %v67 = vld [vmem:[#allocation5] sm:$0xff]
    %v68 = vld [vmem:[#allocation5 + $0x8] sm:$0xff]
    %v69 = vld [vmem:[#allocation5 + $0x10] sm:$0xff]
    %v70 = vld [vmem:[#allocation5 + $0x18] sm:$0xff]
    %v71 = vld [vmem:[%s2] sm:$0x1]
    %v73 = vperm.slane %v71, 0
    %vm75 = vcmask 261120
    %v77 = vsel %vm75, %v66, 0
    %79 = vmatpush.msra.mxu0 0.0
    %80 = vmatpush.msra.mxu0 0.0
    %81 = vmatpush.msra.mxu0 0.0
    %82 = vmatpush.msra.mxu0 0.0
    %83 = vmatpush.msra.mxu0 0.0
    %84 = vmatpush.msra.mxu0 0.0
    %85 = vmatpush.msra.mxu0 0.0
    %86 = vmatpush.msra.mxu0 0.0
    %87 = vmatpush.msra.mxu0 0.0
    %88 = vmatpush.msra.mxu0 0.0
    %89 = vmatpush.msra.mxu0 0.0
    %90 = vmatpush.msra.mxu0 0.0
    %91 = vmatpush.msra.mxu0 %v70
    %92 = vmatpush.msra.mxu0 %v69
    %93 = vmatpush.msra.mxu0 %v68
    %94 = vmatpush.msra.mxu0 %v67
    %95 = vmatmul.f32.gmra.mxu0 %v77
    %v96 = vpop.f32.mrf.mxu0
    %v97 = vadd.f32 %v73, %v96
    %98 = vdwg.mxu0
    %v99 = vld [vmem:[#allocation7] sm:$0xff]
    %v100 = vld [vmem:[#allocation7 + $0x8] sm:$0xff]
    %v101 = vld [vmem:[#allocation7 + $0x10] sm:$0xff]
    %v102 = vld [vmem:[#allocation7 + $0x18] sm:$0xff]
    %v103 = vld [vmem:[%s4] sm:$0x1]
    %v104 = vmul.f32 %v97, %v97
    %v105 = vsel %vm75, %v104, 0.0
    %106 = vadd.xlane.f32.xlu0 %v105
    %v107 = vpop.xlane.xlu0 %106
    %v109 = vsel %vm75, %v97, 0
    %111 = vmatpush.msra.mxu0 0.0
    %112 = vmatpush.msra.mxu0 0.0
    %113 = vmatpush.msra.mxu0 0.0
    %114 = vmatpush.msra.mxu0 0.0
    %115 = vmatpush.msra.mxu0 0.0
    %116 = vmatpush.msra.mxu0 0.0
    %117 = vmatpush.msra.mxu0 0.0
    %118 = vmatpush.msra.mxu0 0.0
    %119 = vmatpush.msra.mxu0 0.0
    %120 = vmatpush.msra.mxu0 0.0
    %121 = vmatpush.msra.mxu0 0.0
    %122 = vmatpush.msra.mxu0 0.0
    %123 = vmatpush.msra.mxu0 %v102
    %124 = vmatpush.msra.mxu0 %v101
    %125 = vmatpush.msra.mxu0 %v100
    %126 = vmatpush.msra.mxu0 %v99
    %127 = vmatmul.f32.gmra.mxu0 %v109
    %v128 = vpop.f32.mrf.mxu0
    %v129 = vadd.f32 0.0, %v128
    %130 = vdwg.mxu0
    %v132 = vperm.slane %v103, 0
    %v134 = vadd.f32 %v107, %v132
    %v135 = vadd.f32 %v134, %v129
    %v136 = vmax.f32 %v135, 1.0
    %v137 = vrcp.pop %v136
    %v138 = vmul.f32 %v136, %v137
    %v139 = vsub.f32 1.0, %v138
    %v140 = vmul.f32 %v137, %v139
    %v141 = vadd.f32 %v137, %v140
    %vm142 = vweird.f32 %v136
    %vm143 = vweird.f32 %v137
    %vm144 = vmor %vm142, %vm143
    %v145 = vsel %vm144, %v137, %v141
    %v146 = vand.u32 2147483647, %v136
    %vm147 = vcmp.eq.f32.partialorder %v146, 8.507059e+37
    %v148 = vand.u32 %v136, 2147483648
    %v149 = vor.u32 1.1754944e-38, %v148
    %v150 = vsel %vm147, %v149, %v145
    %151 = vadd.xlane.f32.xlu0 %v150
    %v152 = vpop.xlane.xlu0 %151
    %v153 = vrcp.pop %v152
    %v154 = vmul.f32 %v152, %v153
    %v155 = vsub.f32 1.0, %v154
    %v156 = vmul.f32 %v153, %v155
    %v157 = vadd.f32 %v153, %v156
    %vm158 = vweird.f32 %v152
    %vm159 = vweird.f32 %v153
    %vm160 = vmor %vm158, %vm159
    %v161 = vsel %vm160, %v153, %v157
    %v162 = vand.u32 2147483647, %v152
    %vm163 = vcmp.eq.f32.partialorder %v162, 8.507059e+37
    %v164 = vand.u32 %v152, 2147483648
    %v165 = vor.u32 1.1754944e-38, %v164
    %v166 = vsel %vm163, %v165, %v161
    %v167 = vmul.f32 %v150, %v166
    %168 = vst [vmem:[#allocation8] sm:$0xff] %v167
    // Predicated region
    $region34: #{tpu_custom_call.1} parent=1 // pred_check
      _
    $region35: #{tpu_custom_call.1} parent=1 // pred_check_branch
      %170 = sbr.rel (0) target = $region37
    $region36: #{tpu_custom_call.1} parent=1 // pred_region
      %172 = vsyncadd [#allocation4], 0
      %s174 = sshll.u32 [#allocation8], 4
      %s175 = int_to_ptr.vmem [resolvable:$true] %s174
      %s176 = sshll.u32 %s5, 4
      %s177 = int_to_ptr.hbm [resolvable:$true] %s176
      %179 = dma.vmem_to_hbm [thread:$0]  %s175, 128, %s177, [#allocation4]
    $region37: #{tpu_custom_call.1} parent=1 // pred_fallthru
      _
    // Predicated region
    $region38: #{tpu_custom_call.1} parent=1 // pred_check
      _
    $region39: #{tpu_custom_call.1} parent=1 // pred_check_branch
      %181 = sbr.rel (0) target = $region41
    $region40: #{tpu_custom_call.1} parent=1 // pred_region
      %183 = dma.done [#allocation4], 128
    $region41: #{tpu_custom_call.1} parent=1 // pred_fallthru
      _
    %184 = vsyncpa [#allocation3], 1
    %185 = vsyncpa [#allocation6], 1
    %186 = vsyncpa [#allocation4], 1

</llo_original>
